<compile_context>
chip_gen: v6e
topology: v6e:2x2x1
jax: 0.10.0
libtpu: 0.0.40
codegen_flags: <defaults>
</compile_context>

<pallas_src>
import functools
import math

import jax
import jax.numpy as jnp
from jax import lax
from jax.experimental import pallas as pl
from jax.experimental.pallas import tpu as pltpu


_VMEM_LIMIT_BYTES = 56 * 1024 * 1024   # scoped VMEM requested from Mosaic (< 64 MiB v7x physical)
_VMEM_BUDGET_BYTES = 42 * 1024 * 1024  # what the working set is planned against (headroom vs limit)
_MXU_ONES_MAX_CLASSES = 4096           # MXU-offload the row sums only while the ones matrix is small


def _smooth_ce_kernel(f_ref, t_ref, o_ref, *, eps, n_class, total_rows, tile_n, use_mxu):
    i = pl.program_id(0)

    f = f_ref[...]                         # (T, C), raw dtype (f32 or bf16)
    tgt = t_ref[...]                       # (T, 1), int32

    on = 1.0 - eps
    off = eps / (n_class - 1)
    # sum_c y*log(y) is a per-row compile-time constant:
    #   (1-eps)*log(1-eps) + (C-1)*(eps/(C-1))*log(eps/(C-1))
    k_const = on * math.log(on) + eps * math.log(off)

    # --- passes on the raw dtype (bf16 stays packed -> half the VPU work) ----
    m_raw = jnp.max(f, axis=1, keepdims=True)                        # (T, 1)
    cls = lax.broadcasted_iota(jnp.int32, f.shape, 1)                # class ids
    f_sel = jnp.where(cls == tgt, f, jnp.zeros_like(f))              # one nonzero per row
    f_t = jnp.sum(f_sel, axis=1, keepdims=True).astype(jnp.float32)  # exact (adds zeros)
    m = m_raw.astype(jnp.float32)                                    # (T, 1) f32

    # --- f32 pass: exp(z) plus the two row sums -------------------------------
    f32 = f.astype(jnp.float32)            # matches feature.float() in the reference
    e = jnp.exp(f32 - m)                   # (T, C) f32

    if use_mxu:
        # Row sums as (T,C)@(C,128) matmuls: the reduce-adds ride the idle MXU
        # slot instead of the saturating VALU slot.
        ones = jnp.ones((n_class, 128), dtype=jnp.float32)
        sum_e = jnp.dot(e, ones, preferred_element_type=jnp.float32)[:, :1]
        sum_f = jnp.dot(f32, ones, preferred_element_type=jnp.float32)[:, :1]
    else:
        sum_e = jnp.sum(e, axis=1, keepdims=True)
        sum_f = jnp.sum(f32, axis=1, keepdims=True)

    lse = jnp.log(sum_e)                   # (T, 1)
    sum_z = sum_f - n_class * m            # sum_c (f - m), closed form (no z tile needed)

    # row_loss = K - (on-off)*log_prb[target] - off*sum_c log_prb
    #   log_prb[target] = (f_t - m) - lse ;  sum_c log_prb = sum_z - C*lse
    row_loss = (
        k_const
        - (on - off) * (f_t - m - lse)
        - off * (sum_z - n_class * lse)
    )                                      # (T, 1)

    # Mask rows past the end of the real array (partial last tile). The vector
    # select cannot leak NaN/Inf from garbage padded rows.
    row_ids = i * tile_n + lax.broadcasted_iota(jnp.int32, row_loss.shape, 0)
    row_loss = jnp.where(row_ids < total_rows, row_loss, 0.0)

    # One lane-dense (8,128) partial-sum slab per grid step -> unmasked vst,
    # no cross-step accumulator, grid axis stays "parallel".
    o_ref[...] = jnp.broadcast_to(jnp.sum(row_loss), o_ref.shape)


def _pick_tile_n(n_rows, n_class, itemsize, use_mxu,
                 vmem_budget_bytes=_VMEM_BUDGET_BYTES):
    """Row-tile size chosen from a whole-working-set VMEM budget.

    Accounts for the double-buffered feature block, the double-buffered
    (tile_n,1) int32 target block (lane-padded to 128 in VMEM), ~5 full-tile
    f32/i32 in-kernel intermediates, the (T,128) matmul outputs, and the
    constant MXU ones matrix.
    """
    budget = vmem_budget_bytes
    if use_mxu:
        budget -= n_class * 128 * 4              # the ones matrix (single copy)

    per_row = (
        2 * n_class * itemsize                   # double-buffered feature block
        + 2 * 128 * 4                            # double-buffered int32 target (lane-padded)
        + 5 * n_class * 4                        # iota / select / f32 cast / z / exp(z)
        + (2 * 128 * 4 if use_mxu else 0)        # (T,128) MXU reduction outputs
    )
    t = max(8, budget // per_row)
    t = (t // 8) * 8                             # sublane-aligned

    padded_rows = ((n_rows + 7) // 8) * 8
    # Keep >= ~8 grid steps on large inputs so both v7x TensorCores get work
    # and the input pipeline stays deep.
    eighth = (padded_rows // 8 // 8) * 8
    if eighth >= 8:
        t = min(t, eighth)
    return max(8, min(t, padded_rows))


def smooth_label_cross_entropy_loss(feature, target, eps=0.1, tile_n=None):
    """feature: [N, C] float (f32 or bf16), target: [N] int. Returns scalar f32."""
    # TODO(synk): ignore_index uses dynamic boolean indexing in the reference;
    # filter rows (and any out-of-range / negative targets) in plain JAX before
    # calling the kernel if that path is needed — out-of-range targets here
    # would silently give z_t = 0.
    N, C = feature.shape
    assert 0.0 < float(eps) < 1.0, "eps must be in (0, 1)"
    assert C > 1

    target2d = target.astype(jnp.int32).reshape(N, 1)

    use_mxu = C <= _MXU_ONES_MAX_CLASSES
    if tile_n is None:
        tile_n = _pick_tile_n(N, C, jnp.dtype(feature.dtype).itemsize, use_mxu)
    grid = pl.cdiv(N, tile_n)

    kernel = functools.partial(
        _smooth_ce_kernel,
        eps=float(eps),
        n_class=C,
        total_rows=N,
        tile_n=tile_n,
        use_mxu=use_mxu,
    )

    partials = pl.pallas_call(
        kernel,
        out_shape=jax.ShapeDtypeStruct((grid, 8, 128), jnp.float32),
        grid_spec=pltpu.PrefetchScalarGridSpec(
            num_scalar_prefetch=0,
            grid=(grid,),
            in_specs=[
                pl.BlockSpec((tile_n, C), lambda i: (i, 0)),
                pl.BlockSpec((tile_n, 1), lambda i: (i, 0)),
            ],
            out_specs=pl.BlockSpec((1, 8, 128), lambda i: (i, 0, 0)),
        ),
        compiler_params=pltpu.CompilerParams(
            dimension_semantics=("parallel",),
            vmem_limit_bytes=_VMEM_LIMIT_BYTES,
        ),
    )(feature, target2d)

    # Tiny epilogue in plain JAX: every lane of each slab holds the same
    # per-tile partial sum, so take lane/sublane 0 of each and do the mean.
    return jnp.sum(partials[:, 0, 0]) / N


def _reference(feature, target, eps=0.1):
    feature = feature.astype(jnp.float32)
    N, C = feature.shape
    one_hot = jax.nn.one_hot(target, C, dtype=jnp.float32)
    y = one_hot * (1.0 - eps) + (1.0 - one_hot) * (eps / (C - 1))
    log_prb = jax.nn.log_softmax(feature, axis=1)
    loss = y * (jnp.log(y) - log_prb)
    return loss.sum(axis=1).mean()


if __name__ == "__main__":
    key = jax.random.PRNGKey(0)
    k1, k2, k3, k4 = jax.random.split(key, 4)

    # Test 1: small shapes (batch=4, seq=8 -> N=32 rows; vocab C=128), auto tile.
    N, C = 32, 128
    feature = jax.random.normal(k1, (N, C), dtype=jnp.float32) * 2.0
    target = jax.random.randint(k2, (N,), 0, C, dtype=jnp.int32)

    loss = smooth_label_cross_entropy_loss(feature, target, eps=0.1)
    loss = jax.block_until_ready(loss)
    ref = _reference(feature, target, eps=0.1)
    assert jnp.allclose(loss, ref, rtol=1e-5, atol=1e-4), (loss, ref)

    # Test 2: N not a multiple of tile_n -> exercises cdiv grid + row masking.
    N2, C2 = 40, 128
    feature2 = jax.random.normal(k3, (N2, C2), dtype=jnp.float32) * 3.0
    target2 = jax.random.randint(k4, (N2,), 0, C2, dtype=jnp.int32)

    loss2 = smooth_label_cross_entropy_loss(feature2, target2, eps=0.1, tile_n=16)
    loss2 = jax.block_until_ready(loss2)
    ref2 = _reference(feature2, target2, eps=0.1)
    assert jnp.allclose(loss2, ref2, rtol=1e-5, atol=1e-4), (loss2, ref2)

    # Test 3: bf16 passthrough (raw-dtype max/select path, in-kernel f32 cast).
    feature_bf16 = feature.astype(jnp.bfloat16)
    loss3 = smooth_label_cross_entropy_loss(feature_bf16, target, eps=0.1)
    loss3 = jax.block_until_ready(loss3)
    ref3 = _reference(feature_bf16.astype(jnp.float32), target, eps=0.1)
    assert jnp.allclose(loss3, ref3, rtol=1e-4, atol=1e-3), (loss3, ref3)

    print("KERNEL_OK")
</pallas_src>

<mosaic_0001>
module attributes {stable_mosaic.version = 11 : i64} {
  func.func @_smooth_ce_kernel(%arg0: i32, %arg1: memref<32x128xf32, #tpu.memory_space<vmem>>, %arg2: memref<32x1xi32, #tpu.memory_space<vmem>>, %arg3: memref<1x8x128xf32, #tpu.memory_space<vmem>>) attributes {dimension_semantics = [#tpu.dimension_semantics<parallel>], iteration_bounds = array<i64: 1>, scalar_prefetch = 0 : i64, scratch_operands = 0 : i64, tpu.core_type = #tpu.core_type<tc>, window_params = [{transform_indices = @transform_0, window_bounds = array<i64: 32, 128>}, {transform_indices = @transform_1, window_bounds = array<i64: 32, 1>}, {transform_indices = @transform_2, window_bounds = array<i64: 1, 8, 128>}]} {
    %c0 = arith.constant 0 : index
    %c0_0 = arith.constant 0 : index
    %0 = vector.load %arg1[%c0, %c0_0] : memref<32x128xf32, #tpu.memory_space<vmem>>, vector<32x128xf32>
    %c0_1 = arith.constant 0 : index
    %c0_2 = arith.constant 0 : index
    %1 = vector.load %arg2[%c0_1, %c0_2] : memref<32x1xi32, #tpu.memory_space<vmem>>, vector<32x1xi32>
    %cst = arith.constant dense<0xFF800000> : vector<32xf32>
    %2 = vector.multi_reduction <maximumf>, %0, %cst [1] : vector<32x128xf32> to vector<32xf32>
    %3 = vector.shape_cast %2 : vector<32xf32> to vector<32x1xf32>
    %4 = tpu.iota {dimensions = array<i32: 1>} : vector<32x128xi32>
    %5 = vector.broadcast %1 : vector<32x1xi32> to vector<32x128xi32>
    %6 = arith.cmpi eq, %4, %5 : vector<32x128xi32>
    %cst_3 = arith.constant 0.000000e+00 : f32
    %7 = vector.broadcast %cst_3 : f32 to vector<32x128xf32>
    %8 = arith.select %6, %0, %7 : vector<32x128xi1>, vector<32x128xf32>
    %cst_4 = arith.constant dense<0.000000e+00> : vector<32xf32>
    %9 = vector.multi_reduction <add>, %8, %cst_4 [1] : vector<32x128xf32> to vector<32xf32>
    %10 = vector.shape_cast %9 : vector<32xf32> to vector<32x1xf32>
    %11 = vector.broadcast %3 : vector<32x1xf32> to vector<32x128xf32>
    %12 = arith.subf %0, %11 : vector<32x128xf32>
    %13 = math.exp %12 : vector<32x128xf32>
    %cst_5 = arith.constant 1.000000e+00 : f32
    %14 = vector.broadcast %cst_5 : f32 to vector<128x128xf32>
    %cst_6 = arith.constant dense<0.000000e+00> : vector<32x128xf32>
    %15 = tpu.matmul %13, %14, %cst_6 {dimension_numbers = #tpu.dot_dimension_numbers<[1], [0], [0], [1], [0, 0, 1, 1], [], []>} : vector<32x128xf32>, vector<128x128xf32>, vector<32x128xf32> -> vector<32x128xf32>
    %16 = vector.extract_strided_slice %15 {offsets = [0, 0], sizes = [32, 1], strides = [1, 1]} : vector<32x128xf32> to vector<32x1xf32>
    %cst_7 = arith.constant dense<0.000000e+00> : vector<32x128xf32>
    %17 = tpu.matmul %0, %14, %cst_7 {dimension_numbers = #tpu.dot_dimension_numbers<[1], [0], [0], [1], [0, 0, 1, 1], [], []>} : vector<32x128xf32>, vector<128x128xf32>, vector<32x128xf32> -> vector<32x128xf32>
    %18 = vector.extract_strided_slice %17 {offsets = [0, 0], sizes = [32, 1], strides = [1, 1]} : vector<32x128xf32> to vector<32x1xf32>
    %19 = math.log %16 : vector<32x1xf32>
    %cst_8 = arith.constant 1.280000e+02 : f32
    %20 = vector.broadcast %cst_8 : f32 to vector<32x1xf32>
    %21 = arith.mulf %20, %3 : vector<32x1xf32>
    %22 = arith.subf %18, %21 : vector<32x1xf32>
    %23 = arith.subf %10, %3 : vector<32x1xf32>
    %24 = arith.subf %23, %19 : vector<32x1xf32>
    %cst_9 = arith.constant 0.899212599 : f32
    %25 = vector.broadcast %cst_9 : f32 to vector<32x1xf32>
    %26 = arith.mulf %25, %24 : vector<32x1xf32>
    %cst_10 = arith.constant -0.809501707 : f32
    %27 = vector.broadcast %cst_10 : f32 to vector<32x1xf32>
    %28 = arith.subf %27, %26 : vector<32x1xf32>
    %cst_11 = arith.constant 1.280000e+02 : f32
    %29 = vector.broadcast %cst_11 : f32 to vector<32x1xf32>
    %30 = arith.mulf %29, %19 : vector<32x1xf32>
    %31 = arith.subf %22, %30 : vector<32x1xf32>
    %cst_12 = arith.constant 7.87401571E-4 : f32
    %32 = vector.broadcast %cst_12 : f32 to vector<32x1xf32>
    %33 = arith.mulf %32, %31 : vector<32x1xf32>
    %34 = arith.subf %28, %33 : vector<32x1xf32>
    %c32_i32 = arith.constant 32 : i32
    %35 = arith.muli %arg0, %c32_i32 : i32
    %36 = tpu.iota {dimensions = array<i32: 0>} : vector<32x1xi32>
    %37 = vector.broadcast %35 : i32 to vector<32x1xi32>
    %38 = arith.addi %37, %36 : vector<32x1xi32>
    %c32_i32_13 = arith.constant 32 : i32
    %39 = vector.broadcast %c32_i32_13 : i32 to vector<32x1xi32>
    %40 = arith.cmpi slt, %38, %39 : vector<32x1xi32>
    %cst_14 = arith.constant 0.000000e+00 : f32
    %41 = vector.broadcast %cst_14 : f32 to vector<32x1xf32>
    %42 = arith.select %40, %34, %41 : vector<32x1xi1>, vector<32x1xf32>
    %43 = vector.shape_cast %42 : vector<32x1xf32> to vector<1x32x1xf32>
    %cst_15 = arith.constant dense<0.000000e+00> : vector<1xf32>
    %44 = vector.multi_reduction <add>, %43, %cst_15 [1, 2] : vector<1x32x1xf32> to vector<1xf32>
    %45 = vector.shape_cast %44 : vector<1xf32> to vector<1x1x1xf32>
    %46 = vector.extract %45[0, 0, 0] : f32 from vector<1x1x1xf32>
    %47 = vector.broadcast %46 : f32 to vector<1x8x128xf32>
    %c0_16 = arith.constant 0 : index
    %c0_17 = arith.constant 0 : index
    %c0_18 = arith.constant 0 : index
    %48 = vector.load %arg3[%c0_16, %c0_17, %c0_18] : memref<1x8x128xf32, #tpu.memory_space<vmem>>, vector<1x8x128xf32>
    tpu.vector_store %arg3[%c0_16, %c0_17, %c0_18], %47 {strides = array<i32>} : memref<1x8x128xf32, #tpu.memory_space<vmem>>, vector<1x8x128xf32>,
    return
  }
  func.func @transform_0(%arg0: i32) -> (i32, i32) {
    %c0_i32 = arith.constant 0 : i32
    %c0_i32_0 = arith.constant 0 : i32
    return %arg0, %c0_i32 : i32, i32
  }
  func.func @transform_1(%arg0: i32) -> (i32, i32) {
    %c0_i32 = arith.constant 0 : i32
    %c0_i32_0 = arith.constant 0 : i32
    return %arg0, %c0_i32 : i32, i32
  }
  func.func @transform_2(%arg0: i32) -> (i32, i32, i32) {
    %c0_i32 = arith.constant 0 : i32
    %c0_i32_0 = arith.constant 0 : i32
    %c0_i32_1 = arith.constant 0 : i32
    return %arg0, %c0_i32, %c0_i32_0 : i32, i32, i32
  }
}

</mosaic_0001>

<llo_original>
// kernel: tpu_custom_call.1
$region0: #{tpu_custom_call.1}
  #allocation0 [shape = 'u32[]', space=smem, size = 0x4, offset = 0x4, fixed_abs, tag = 'smem constant byte address 0x4 - core index']
  #allocation1 [shape = 'u32[144,128]{1,0:T(1,128)}', space=vmem, size = 0x12000, scoped, tag = 'internal scratch']
  %s0 = inlined_call_operand.vmem [shape: f32[32,128], index: 0, kind: input, shape index: {}]
  %s1 = inlined_call_operand.vmem [shape: s32[32,1], index: 1, kind: input, shape index: {}]
  %s2 = inlined_call_operand.hbm [shape: f32[1,8,128], index: 2, kind: output, shape index: {}]
  %s3 = sld [smem:[#allocation0]]
  $region18: #{tpu_custom_call.1} parent=0
    _
  %s5 = ssub.s32 1, %s3
  %s6 = scalar_select 0, %s5, %s3
  $region1: #{tpu_custom_call.1} parent=0
    #allocation2 [shape = 'u8[4096]{0}', space=vmem, size = 0x1000, scoped, tag = 'output window, operand 0, single buffered']
    #allocation3 [shape = 's32[1]{0}', space=sflag, size = 0x4, scoped, tag = 'scoped memory for tpu_custom_call.1']
    %7 = vsyncpa [#allocation3], 0
    // Predicated region
    $region2: #{tpu_custom_call.1} parent=1 // pred_check
      _
    $region3: #{tpu_custom_call.1} parent=1 // pred_check_branch
      %9 = sbr.rel (0) target = $region5
    $region4: #{tpu_custom_call.1} parent=1 // pred_region
      _
    $region5: #{tpu_custom_call.1} parent=1 // pred_fallthru
      _
    // Predicated region
    $region6: #{tpu_custom_call.1} parent=1 // pred_check
      _
    $region7: #{tpu_custom_call.1} parent=1 // pred_check_branch
      %11 = sbr.rel (0) target = $region9
    $region8: #{tpu_custom_call.1} parent=1 // pred_region
      _
    $region9: #{tpu_custom_call.1} parent=1 // pred_fallthru
      _
    %v12 = vld [vmem:[%s0] sm:$0xff]
    %v13 = vld [vmem:[%s0 + $0x8] sm:$0xff]
    %v14 = vld [vmem:[%s0 + $0x10] sm:$0xff]
    %v15 = vld [vmem:[%s0 + $0x18] sm:$0xff]
    %v16 = vld [vmem:[%s1] sm:$0xff]
    %v17 = vld [vmem:[%s1 + $0x8] sm:$0xff]
    %v18 = vld [vmem:[%s1 + $0x10] sm:$0xff]
    %v19 = vld [vmem:[%s1 + $0x18] sm:$0xff]
    %20 = vmax.xlane.f32.xlu0 %v12
    %v21 = vpop.xlane.xlu0 %20
    %22 = vmax.xlane.f32.xlu0 %v13
    %v23 = vpop.xlane.xlu0 %22
    %24 = vmax.xlane.f32.xlu0 %v14
    %v25 = vpop.xlane.xlu0 %24
    %26 = vmax.xlane.f32.xlu0 %v15
    %v27 = vpop.xlane.xlu0 %26
    %v28 = vlaneseq
    %v29 = vand.u32 %v28, 127
    %30 = vset.pattern.permute.xlu0 0
    %31 = vperm.xlu0 %30, %v16
    %v32 = vpop.permute.xlu0 %31
    %33 = vset.pattern.permute.xlu0 0
    %34 = vperm.xlu0 %33, %v17
    %v35 = vpop.permute.xlu0 %34
    %36 = vset.pattern.permute.xlu0 0
    %37 = vperm.xlu0 %36, %v18
    %v38 = vpop.permute.xlu0 %37
    %39 = vset.pattern.permute.xlu0 0
    %40 = vperm.xlu0 %39, %v19
    %v41 = vpop.permute.xlu0 %40
    %vm42 = vcmp.eq.s32.totalorder %v29, %v32
    %vm43 = vcmp.eq.s32.totalorder %v29, %v35
    %vm44 = vcmp.eq.s32.totalorder %v29, %v38
    %vm45 = vcmp.eq.s32.totalorder %v29, %v41
    %v46 = vsel %vm42, %v12, 0.0
    %v47 = vsel %vm43, %v13, 0.0
    %v48 = vsel %vm44, %v14, 0.0
    %v49 = vsel %vm45, %v15, 0.0
    %50 = vadd.xlane.f32.xlu0 %v46
    %v51 = vpop.xlane.xlu0 %50
    %52 = vadd.xlane.f32.xlu0 %v47
    %v53 = vpop.xlane.xlu0 %52
    %54 = vadd.xlane.f32.xlu0 %v48
    %v55 = vpop.xlane.xlu0 %54
    %56 = vadd.xlane.f32.xlu0 %v49
    %v57 = vpop.xlane.xlu0 %56
    %v58 = vsub.f32 %v12, %v21
    %v59 = vsub.f32 %v13, %v23
    %v60 = vsub.f32 %v14, %v25
    %v61 = vsub.f32 %v15, %v27
    %v62 = vmul.f32 %v58, 1.442695
    %v63 = vpow.pop %v62
    %v64 = vmul.f32 %v59, 1.442695
    %v65 = vpow.pop %v64
    %v66 = vmul.f32 %v60, 1.442695
    %v67 = vpow.pop %v66
    %v68 = vmul.f32 %v61, 1.442695
    %v69 = vpow.pop %v68
    %70 = vmatprep.subr.mxu0 0.0
    %71 = vmatpush1.msra.mxu0 1.0
    %72 = vmatprep.subr.mxu0 0.0
    %73 = vmatpush1.msra.mxu0 1.0
    %74 = vmatprep.subr.mxu0 0.0
    %75 = vmatpush1.msra.mxu0 1.0
    %76 = vmatprep.subr.mxu0 0.0
    %77 = vmatpush1.msra.mxu0 1.0
    %78 = vmatprep.subr.mxu0 0.0
    %79 = vmatpush1.msra.mxu0 1.0
    %80 = vmatprep.subr.mxu0 0.0
    %81 = vmatpush1.msra.mxu0 1.0
    %82 = vmatprep.subr.mxu0 0.0
    %83 = vmatpush1.msra.mxu0 1.0
    %84 = vmatprep.subr.mxu0 0.0
    %85 = vmatpush1.msra.mxu0 1.0
    %86 = vmatprep.subr.mxu0 0.0
    %87 = vmatpush1.msra.mxu0 1.0
    %88 = vmatprep.subr.mxu0 0.0
    %89 = vmatpush1.msra.mxu0 1.0
    %90 = vmatprep.subr.mxu0 0.0
    %91 = vmatpush1.msra.mxu0 1.0
    %92 = vmatprep.subr.mxu0 0.0
    %93 = vmatpush1.msra.mxu0 1.0
    %94 = vmatprep.subr.mxu0 0.0
    %95 = vmatpush1.msra.mxu0 1.0
    %96 = vmatprep.subr.mxu0 0.0
    %97 = vmatpush1.msra.mxu0 1.0
    %98 = vmatprep.subr.mxu0 0.0
    %99 = vmatpush1.msra.mxu0 1.0
    %100 = vmatprep.subr.mxu0 0.0
    %101 = vmatpush1.msra.mxu0 1.0
    %102 = vmatprep.subr.mxu0 0.0
    %103 = vmatpush2.msra.mxu0 0.0
    %104 = vmatprep.subr.mxu0 0.0
    %105 = vmatpush2.msra.mxu0 0.0
    %106 = vmatprep.subr.mxu0 0.0
    %107 = vmatpush2.msra.mxu0 0.0
    %108 = vmatprep.subr.mxu0 0.0
    %109 = vmatpush2.msra.mxu0 0.0
    %110 = vmatprep.subr.mxu0 0.0
    %111 = vmatpush2.msra.mxu0 0.0
    %112 = vmatprep.subr.mxu0 0.0
    %113 = vmatpush2.msra.mxu0 0.0
    %114 = vmatprep.subr.mxu0 0.0
    %115 = vmatpush2.msra.mxu0 0.0
    %116 = vmatprep.subr.mxu0 0.0
    %117 = vmatpush2.msra.mxu0 0.0
    %118 = vmatprep.subr.mxu0 0.0
    %119 = vmatpush2.msra.mxu0 0.0
    %120 = vmatprep.subr.mxu0 0.0
    %121 = vmatpush2.msra.mxu0 0.0
    %122 = vmatprep.subr.mxu0 0.0
    %123 = vmatpush2.msra.mxu0 0.0
    %124 = vmatprep.subr.mxu0 0.0
    %125 = vmatpush2.msra.mxu0 0.0
    %126 = vmatprep.subr.mxu0 0.0
    %127 = vmatpush2.msra.mxu0 0.0
    %128 = vmatprep.subr.mxu0 0.0
    %129 = vmatpush2.msra.mxu0 0.0
    %130 = vmatprep.subr.mxu0 0.0
    %131 = vmatpush2.msra.mxu0 0.0
    %132 = vmatprep.subr.mxu0 0.0
    %133 = vmatpush2.msra.mxu0 0.0
    %134 = vmatprep.mubr.f32.mxu0 0.0
    %135 = vmatmul.mubr.f32.gmra.mxu0 %v63
    %v136 = vpop.f32.mrf.mxu0
    %v137 = vadd.f32 0.0, %v136
    %v138 = vpop.f32.mrf.mxu0
    %139 = vmatprep.mubr.f32.mxu0 0.0
    %140 = vmatmul.mubr.f32.gmra.mxu0 %v65
    %v141 = vpop.f32.mrf.mxu0
    %v142 = vadd.f32 0.0, %v141
    %v143 = vpop.f32.mrf.mxu0
    %144 = vmatprep.mubr.f32.mxu0 0.0
    %145 = vmatmul.mubr.f32.gmra.mxu0 %v67
    %v146 = vpop.f32.mrf.mxu0
    %v147 = vadd.f32 0.0, %v146
    %v148 = vpop.f32.mrf.mxu0
    %149 = vmatprep.mubr.f32.mxu0 0.0
    %150 = vmatmul.mubr.f32.gmra.mxu0 %v69
    %v151 = vpop.f32.mrf.mxu0
    %v152 = vadd.f32 0.0, %v151
    %v153 = vpop.f32.mrf.mxu0
    %154 = vdwg.mxu0
    %155 = vmatprep.subr.mxu0 0.0
    %156 = vmatpush1.msra.mxu0 1.0
    %157 = vmatprep.subr.mxu0 0.0
    %158 = vmatpush1.msra.mxu0 1.0
    %159 = vmatprep.subr.mxu0 0.0
    %160 = vmatpush1.msra.mxu0 1.0
    %161 = vmatprep.subr.mxu0 0.0
    %162 = vmatpush1.msra.mxu0 1.0
    %163 = vmatprep.subr.mxu0 0.0
    %164 = vmatpush1.msra.mxu0 1.0
    %165 = vmatprep.subr.mxu0 0.0
    %166 = vmatpush1.msra.mxu0 1.0
    %167 = vmatprep.subr.mxu0 0.0
    %168 = vmatpush1.msra.mxu0 1.0
    %169 = vmatprep.subr.mxu0 0.0
    %170 = vmatpush1.msra.mxu0 1.0
    %171 = vmatprep.subr.mxu0 0.0
    %172 = vmatpush1.msra.mxu0 1.0
    %173 = vmatprep.subr.mxu0 0.0
    %174 = vmatpush1.msra.mxu0 1.0
    %175 = vmatprep.subr.mxu0 0.0
    %176 = vmatpush1.msra.mxu0 1.0
    %177 = vmatprep.subr.mxu0 0.0
    %178 = vmatpush1.msra.mxu0 1.0
    %179 = vmatprep.subr.mxu0 0.0
    %180 = vmatpush1.msra.mxu0 1.0
    %181 = vmatprep.subr.mxu0 0.0
    %182 = vmatpush1.msra.mxu0 1.0
    %183 = vmatprep.subr.mxu0 0.0
    %184 = vmatpush1.msra.mxu0 1.0
    %185 = vmatprep.subr.mxu0 0.0
    %186 = vmatpush1.msra.mxu0 1.0
    %187 = vmatprep.subr.mxu0 0.0
    %188 = vmatpush2.msra.mxu0 0.0
    %189 = vmatprep.subr.mxu0 0.0
    %190 = vmatpush2.msra.mxu0 0.0
    %191 = vmatprep.subr.mxu0 0.0
    %192 = vmatpush2.msra.mxu0 0.0
    %193 = vmatprep.subr.mxu0 0.0
    %194 = vmatpush2.msra.mxu0 0.0
    %195 = vmatprep.subr.mxu0 0.0
    %196 = vmatpush2.msra.mxu0 0.0
    %197 = vmatprep.subr.mxu0 0.0
    %198 = vmatpush2.msra.mxu0 0.0
    %199 = vmatprep.subr.mxu0 0.0
    %200 = vmatpush2.msra.mxu0 0.0
    %201 = vmatprep.subr.mxu0 0.0
    %202 = vmatpush2.msra.mxu0 0.0
    %203 = vmatprep.subr.mxu0 0.0
    %204 = vmatpush2.msra.mxu0 0.0
    %205 = vmatprep.subr.mxu0 0.0
    %206 = vmatpush2.msra.mxu0 0.0
    %207 = vmatprep.subr.mxu0 0.0
    %208 = vmatpush2.msra.mxu0 0.0
    %209 = vmatprep.subr.mxu0 0.0
    %210 = vmatpush2.msra.mxu0 0.0
    %211 = vmatprep.subr.mxu0 0.0
    %212 = vmatpush2.msra.mxu0 0.0
    %213 = vmatprep.subr.mxu0 0.0
    %214 = vmatpush2.msra.mxu0 0.0
    %215 = vmatprep.subr.mxu0 0.0
    %216 = vmatpush2.msra.mxu0 0.0
    %217 = vmatprep.subr.mxu0 0.0
    %218 = vmatpush2.msra.mxu0 0.0
    %219 = vmatprep.mubr.f32.mxu0 0.0
    %220 = vmatmul.mubr.f32.gmra.mxu0 %v12
    %v221 = vpop.f32.mrf.mxu0
    %v222 = vadd.f32 0.0, %v221
    %v223 = vpop.f32.mrf.mxu0
    %224 = vmatprep.mubr.f32.mxu0 0.0
    %225 = vmatmul.mubr.f32.gmra.mxu0 %v13
    %v226 = vpop.f32.mrf.mxu0
    %v227 = vadd.f32 0.0, %v226
    %v228 = vpop.f32.mrf.mxu0
    %229 = vmatprep.mubr.f32.mxu0 0.0
    %230 = vmatmul.mubr.f32.gmra.mxu0 %v14
    %v231 = vpop.f32.mrf.mxu0
    %v232 = vadd.f32 0.0, %v231
    %v233 = vpop.f32.mrf.mxu0
    %234 = vmatprep.mubr.f32.mxu0 0.0
    %235 = vmatmul.mubr.f32.gmra.mxu0 %v15
    %v236 = vpop.f32.mrf.mxu0
    %v237 = vadd.f32 0.0, %v236
    %v238 = vpop.f32.mrf.mxu0
    %239 = vdwg.mxu0
    %v240 = vlog2.pop %v137
    %v241 = vmul.f32 %v240, 0.6931472
    %v242 = vlog2.pop %v142
    %v243 = vmul.f32 %v242, 0.6931472
    %v244 = vlog2.pop %v147
    %v245 = vmul.f32 %v244, 0.6931472
    %v246 = vlog2.pop %v152
    %v247 = vmul.f32 %v246, 0.6931472
    %v248 = vmul.f32 %v21, 128.0
    %v249 = vmul.f32 %v23, 128.0
    %v250 = vmul.f32 %v25, 128.0
    %v251 = vmul.f32 %v27, 128.0
    %v252 = vsub.f32 %v222, %v248
    %v253 = vsub.f32 %v227, %v249
    %v254 = vsub.f32 %v232, %v250
    %v255 = vsub.f32 %v237, %v251
    %v256 = vsub.f32 %v51, %v21
    %v257 = vsub.f32 %v53, %v23
    %v258 = vsub.f32 %v55, %v25
    %v259 = vsub.f32 %v57, %v27
    %v260 = vsub.f32 %v256, %v241
    %v261 = vsub.f32 %v257, %v243
    %v262 = vsub.f32 %v258, %v245
    %v263 = vsub.f32 %v259, %v247
    %v264 = vmul.f32 %v260, 0.8992126
    %v265 = vmul.f32 %v261, 0.8992126
    %v266 = vmul.f32 %v262, 0.8992126
    %v267 = vmul.f32 %v263, 0.8992126
    %v268 = vsub.f32 -0.8095017, %v264
    %v269 = vsub.f32 -0.8095017, %v265
    %v270 = vsub.f32 -0.8095017, %v266
    %v271 = vsub.f32 -0.8095017, %v267
    %v272 = vmul.f32 %v241, 128.0
    %v273 = vmul.f32 %v243, 128.0
    %v274 = vmul.f32 %v245, 128.0
    %v275 = vmul.f32 %v247, 128.0
    %v276 = vsub.f32 %v252, %v272
    %v277 = vsub.f32 %v253, %v273
    %v278 = vsub.f32 %v254, %v274
    %v279 = vsub.f32 %v255, %v275
    %v280 = vmul.f32 %v276, 0.0007874016
    %v281 = vmul.f32 %v277, 0.0007874016
    %v282 = vmul.f32 %v278, 0.0007874016
    %v283 = vmul.f32 %v279, 0.0007874016
    %v284 = vsub.f32 %v268, %v280
    %v285 = vsub.f32 %v269, %v281
    %v286 = vsub.f32 %v270, %v282
    %v287 = vsub.f32 %v271, %v283
    %s288 = smul.u32 0, 32
    %v289 = vlaneseq
    %v290 = vshrl.u32 %v289, 7
    %v291 = vadd.s32 %v290, 8
    %v292 = vadd.s32 %v290, 16
    %v293 = vadd.s32 %v290, 24
    %v294 = vstv %s288
    %v295 = vadd.s32 %v294, %v290
    %v296 = vadd.s32 %v294, %v291
    %v297 = vadd.s32 %v294, %v292
    %v298 = vadd.s32 %v294, %v293
    %vm299 = vcmp.lt.s32.totalorder %v295, 32
    %vm300 = vcmp.lt.s32.totalorder %v296, 32
    %vm301 = vcmp.lt.s32.totalorder %v297, 32
    %vm302 = vcmp.lt.s32.totalorder %v298, 32
    %v303 = vsel %vm299, %v284, 0.0
    %v304 = vsel %vm300, %v285, 0.0
    %v305 = vsel %vm301, %v286, 0.0
    %v306 = vsel %vm302, %v287, 0.0
    %vm307 = vcmask 7168
    %v308 = vsel %vm307, %v303, 0.0
    %v309 = vsel %vm307, %v304, 0.0
    %v310 = vadd.f32 %v308, %v309
    %v311 = vsel %vm307, %v305, 0.0
    %v312 = vadd.f32 %v310, %v311
    %v313 = vsel %vm307, %v306, 0.0
    %v314 = vadd.f32 %v312, %v313
    %315 = vadd.xlane.f32.xlu0 %v314
    %v316 = vpop.xlane.xlu0 %315
    %v317 = vrot.slane %v316, 4
    %v318 = vadd.f32 %v316, %v317
    %v319 = vrot.slane %v318, 2
    %v320 = vadd.f32 %v318, %v319
    %v321 = vrot.slane %v320, 1
    %v322 = vadd.f32 %v320, %v321
    %s323 = vtos %v322
    %v324 = vstv %s323
    %325 = vst [vmem:[#allocation2] sm:$0xff] %v324
    // Predicated region
    $region10: #{tpu_custom_call.1} parent=1 // pred_check
      _
    $region11: #{tpu_custom_call.1} parent=1 // pred_check_branch
      %327 = sbr.rel (0) target = $region13
    $region12: #{tpu_custom_call.1} parent=1 // pred_region
      %s329 = ssub.s32 128, 128
      %330 = vsyncadd [#allocation3], %s329
      %s332 = sshll.u32 [#allocation2], 4
      %s333 = int_to_ptr.vmem [resolvable:$true] %s332
      %335 = dma.vmem_to_hbm [thread:$0]  %s333, 128, %s2, [#allocation3]
    $region13: #{tpu_custom_call.1} parent=1 // pred_fallthru
      _
    // Predicated region
    $region14: #{tpu_custom_call.1} parent=1 // pred_check
      _
    $region15: #{tpu_custom_call.1} parent=1 // pred_check_branch
      %337 = sbr.rel (0) target = $region17
    $region16: #{tpu_custom_call.1} parent=1 // pred_region
      %338 = dma.done [#allocation3], 128
    $region17: #{tpu_custom_call.1} parent=1 // pred_fallthru
      _
    %339 = vsyncpa [#allocation3], 1

</llo_original>
